<compile_context>
chip_gen: v5e
topology: v5e:2x2
jax: 0.10.0
libtpu: 0.0.40
codegen_flags: <defaults>
</compile_context>

<pallas_src>
import jax
import jax.numpy as jnp
from jax import lax
from jax.experimental import pallas as pl
from jax.experimental.pallas import tpu as pltpu

FILTER_DIMS = (1, 3, 3, 5)              # filter_dimensions
NUM_FILTERS = 8                         # number_filters
MAX_K = max(FILTER_DIMS)                # common (zero-padded) tap count = 5
MAX_PAD = (MAX_K - 1) // 2
N_CH = len(FILTER_DIMS) * NUM_FILTERS   # 32 stacked conv channels


def _conv_pool_mlp_kernel(x_ref, wcol_ref, bcol_ref, womat_ref, bout_ref, o_ref):
    """One batch tile: im2col conv -> channel max -> (L -> 1) linear -> sigmoid."""
    TB, L, D = x_ref.shape
    R = TB * L

    x3 = x_ref[...].astype(jnp.float32)                       # (TB, L, D)

    # im2col: 5 tap-shifted copies of the activations; Conv1d 'same' zero
    # padding is realized by padding each shifted copy with zeros along L,
    # so there is no cross-example leakage and no wrapper-side jnp.pad.
    cols = []
    for j in range(MAX_K):                                     # static unroll (5 taps)
        off = j - MAX_PAD                                      # input offset in {-2..2}
        if off == 0:
            cols.append(x3)
        elif off > 0:
            cols.append(jnp.concatenate(
                [x3[:, off:, :], jnp.zeros((TB, off, D), jnp.float32)], axis=1))
        else:
            cols.append(jnp.concatenate(
                [jnp.zeros((TB, -off, D), jnp.float32), x3[:, :L + off, :]], axis=1))
    # (TB, L, 5*D) -> single flatten -> bf16 MXU operand.
    xcol = jnp.concatenate(cols, axis=-1).reshape(R, MAX_K * D).astype(jnp.bfloat16)

    # All 4 conv layers as ONE MXU matmul (K = 5*D, N = 32), f32 accumulation.
    conv = jnp.dot(xcol, wcol_ref[...], preferred_element_type=jnp.float32)
    conv = conv + bcol_ref[...]                                # (R, 32), bias before pool

    # MaxPool1d over the 32 stacked channels == lane-axis max.
    pooled = jnp.max(conv, axis=-1, keepdims=True)             # (R, 1)

    # TODO(synk): nn.Dropout(p=0.8) training-mode masking not modelled; this is
    # eval-mode (identity) semantics.
    # OutputLayer: block-diagonal (TB, TB*L) weight performs the per-example
    # (seq_len -> 1) reduction in one tiny matmul; then bias + sigmoid.
    logits = jnp.dot(womat_ref[...], pooled,
                     preferred_element_type=jnp.float32) + bout_ref[...]   # (TB, 1)
    o_ref[...] = 1.0 / (1.0 + jnp.exp(-logits))


def _pack_conv_weights(conv_params, emb_dim):
    """Stack the 4 conv layers into one zero-padded im2col weight / bias."""
    wcol = jnp.zeros((MAX_K, emb_dim, N_CH), jnp.float32)
    biases = []
    for ci, (w, b) in enumerate(conv_params):                  # w: (k, D, F)
        k = FILTER_DIMS[ci]
        j0 = MAX_PAD - (k - 1) // 2                            # align tap offsets
        wcol = wcol.at[j0:j0 + k, :, ci * NUM_FILTERS:(ci + 1) * NUM_FILTERS].set(w)
        biases.append(b.reshape(1, NUM_FILTERS))
    wcol = wcol.reshape(MAX_K * emb_dim, N_CH).astype(jnp.bfloat16)
    bcol = jnp.concatenate(biases, axis=-1)                    # (1, 32) f32
    return wcol, bcol


def forward(seq, params, *, batch_tile=8):
    """seq: (B, L) int32 token ids -> (B, 1) sigmoid output."""
    B, L = seq.shape
    D = params["embedding"].shape[1]
    TB = batch_tile if B % batch_tile == 0 else B              # fallback: block == full dim

    # Embedding lookup (gather) is glue; plain JAX.  bf16 activations halve
    # HBM/VMEM bytes for x; accumulation stays f32 inside the kernel.
    x = jnp.take(params["embedding"], seq, axis=0).astype(jnp.bfloat16)    # (B, L, D)

    wcol, bcol = _pack_conv_weights(params["conv"], D)
    # Output Linear as a block-diagonal matrix: row b carries w_out in columns
    # [b*L, (b+1)*L), so the in-kernel matmul does the per-example reduction.
    womat = jnp.kron(jnp.eye(TB, dtype=jnp.float32),
                     params["w_out"].reshape(1, L))            # (TB, TB*L)
    bout = params["b_out"].reshape(1, 1)

    return pl.pallas_call(
        _conv_pool_mlp_kernel,
        out_shape=jax.ShapeDtypeStruct((B, 1), jnp.float32),
        grid=(B // TB,),
        in_specs=[
            pl.BlockSpec((TB, L, D), lambda i: (i, 0, 0)),     # batch-tiled activations
            pl.BlockSpec(wcol.shape, lambda i: (0, 0)),        # stacked im2col conv weight
            pl.BlockSpec(bcol.shape, lambda i: (0, 0)),        # stacked conv bias
            pl.BlockSpec(womat.shape, lambda i: (0, 0)),       # block-diag output weight
            pl.BlockSpec(bout.shape, lambda i: (0, 0)),        # output bias
        ],
        out_specs=pl.BlockSpec((TB, 1), lambda i: (i, 0)),
        compiler_params=pltpu.CompilerParams(
            dimension_semantics=("parallel",),                 # megacore-shard batch tiles
            vmem_limit_bytes=32 * 1024 * 1024),
    )(x, wcol, bcol, womat, bout)


def init_params(key, vocab_size, embedding_dim, seq_len):
    n_keys = 1 + 2 * len(FILTER_DIMS) + 2
    keys = jax.random.split(key, n_keys)
    emb = jax.random.normal(keys[0], (vocab_size, embedding_dim), jnp.float32)
    emb = emb.at[0].set(0.0)            # padding_idx=0 row
    conv = []
    for ci, k in enumerate(FILTER_DIMS):
        w = 0.1 * jax.random.normal(keys[1 + 2 * ci],
                                    (k, embedding_dim, NUM_FILTERS), jnp.float32)
        b = 0.1 * jax.random.normal(keys[2 + 2 * ci], (1, NUM_FILTERS), jnp.float32)
        conv.append((w, b))
    w_out = 0.1 * jax.random.normal(keys[-2], (seq_len, 1), jnp.float32)
    b_out = 0.1 * jax.random.normal(keys[-1], (1, 1), jnp.float32)
    return {"embedding": emb, "conv": conv, "w_out": w_out, "b_out": b_out}


def ref_forward(seq, params, *, matmul_dtype=jnp.float32):
    """Pure-JAX reference mirroring the torch forward (eval mode).

    matmul_dtype=jnp.bfloat16 mirrors the kernel's bf16 matmul inputs."""
    x = jnp.take(params["embedding"], seq, axis=0)
    x = x.astype(matmul_dtype).astype(jnp.float32)             # (B, L, D)
    y = jnp.transpose(x, (0, 2, 1))                            # (B, D, L) == NCW
    feats = []
    for (w, b), k in zip(params["conv"], FILTER_DIMS):
        wc = jnp.transpose(w, (2, 1, 0))                       # (F, D, k) == OIW
        wc = wc.astype(matmul_dtype).astype(jnp.float32)
        pad = (k - 1) // 2
        out = lax.conv_general_dilated(
            y, wc, window_strides=(1,), padding=[(pad, pad)],
            dimension_numbers=("NCH", "OIH", "NCH"),
            precision=lax.Precision.HIGHEST) + b.reshape(1, -1, 1)
        feats.append(out)
    fc = jnp.concatenate(feats, axis=1)                        # (B, 32, L)
    pooled = jnp.max(fc, axis=1)                               # MaxPool1d(32) -> (B, L)
    logits = jnp.dot(pooled, params["w_out"],
                     precision=lax.Precision.HIGHEST) + params["b_out"]
    return jax.nn.sigmoid(logits)


if __name__ == "__main__":
    VOCAB, EMB_DIM, SEQ_LEN, BATCH = 20, 8, 16, 16
    key = jax.random.PRNGKey(0)
    kp, ks = jax.random.split(key)
    params = init_params(kp, VOCAB, EMB_DIM, SEQ_LEN)
    seq = jax.random.randint(ks, (BATCH, SEQ_LEN), 0, VOCAB, dtype=jnp.int32)

    out = jax.block_until_ready(jax.jit(forward)(seq, params))
    assert out.shape == (BATCH, 1), out.shape

    # Tight check vs. a reference that matches the kernel's bf16 matmul inputs.
    ref_bf16 = ref_forward(seq, params, matmul_dtype=jnp.bfloat16)
    assert jnp.allclose(out, ref_bf16, atol=2e-3, rtol=0), (
        float(jnp.max(jnp.abs(out - ref_bf16))))
    # Looser check vs. the full-f32 reference (covers bf16 input rounding).
    ref_f32 = ref_forward(seq, params)
    assert jnp.allclose(out, ref_f32, atol=2e-2, rtol=0), (
        float(jnp.max(jnp.abs(out - ref_f32))))
    print("KERNEL_OK")
</pallas_src>

<mosaic_0001>
module attributes {stable_mosaic.version = 11 : i64} {
  func.func @_conv_pool_mlp_kernel(%arg0: i32, %arg1: memref<8x16x8xbf16, #tpu.memory_space<vmem>>, %arg2: memref<40x32xbf16, #tpu.memory_space<vmem>>, %arg3: memref<1x32xf32, #tpu.memory_space<vmem>>, %arg4: memref<8x128xf32, #tpu.memory_space<vmem>>, %arg5: memref<1x1xf32, #tpu.memory_space<vmem>>, %arg6: memref<8x1xf32, #tpu.memory_space<vmem>>) attributes {dimension_semantics = [#tpu.dimension_semantics<parallel>], iteration_bounds = array<i64: 2>, scalar_prefetch = 0 : i64, scratch_operands = 0 : i64, tpu.core_type = #tpu.core_type<tc>, window_params = [{transform_indices = @transform_0, window_bounds = array<i64: 8, 16, 8>}, {pipeline_mode = #tpu.pipeline_mode<synchronous>, transform_indices = @transform_1, window_bounds = array<i64: 40, 32>}, {pipeline_mode = #tpu.pipeline_mode<synchronous>, transform_indices = @transform_2, window_bounds = array<i64: 1, 32>}, {pipeline_mode = #tpu.pipeline_mode<synchronous>, transform_indices = @transform_3, window_bounds = array<i64: 8, 128>}, {pipeline_mode = #tpu.pipeline_mode<synchronous>, transform_indices = @transform_4, window_bounds = array<i64: 1, 1>}, {transform_indices = @transform_5, window_bounds = array<i64: 8, 1>}]} {
    %c0 = arith.constant 0 : index
    %c0_0 = arith.constant 0 : index
    %c0_1 = arith.constant 0 : index
    %0 = vector.load %arg1[%c0, %c0_0, %c0_1] : memref<8x16x8xbf16, #tpu.memory_space<vmem>>, vector<8x16x8xbf16>
    %1 = arith.extf %0 : vector<8x16x8xbf16> to vector<8x16x8xf32>
    %cst = arith.constant 0.000000e+00 : f32
    %2 = vector.broadcast %cst : f32 to vector<8x2x8xf32>
    %3 = vector.extract_strided_slice %1 {offsets = [0, 0, 0], sizes = [8, 14, 8], strides = [1, 1, 1]} : vector<8x16x8xf32> to vector<8x14x8xf32>
    %4 = tpu.concatenate %2, %3 in 1 : vector<8x2x8xf32>, vector<8x14x8xf32> -> vector<8x16x8xf32>
    %cst_2 = arith.constant 0.000000e+00 : f32
    %5 = vector.broadcast %cst_2 : f32 to vector<8x1x8xf32>
    %6 = vector.extract_strided_slice %1 {offsets = [0, 0, 0], sizes = [8, 15, 8], strides = [1, 1, 1]} : vector<8x16x8xf32> to vector<8x15x8xf32>
    %7 = tpu.concatenate %5, %6 in 1 : vector<8x1x8xf32>, vector<8x15x8xf32> -> vector<8x16x8xf32>
    %8 = vector.extract_strided_slice %1 {offsets = [0, 1, 0], sizes = [8, 15, 8], strides = [1, 1, 1]} : vector<8x16x8xf32> to vector<8x15x8xf32>
    %cst_3 = arith.constant 0.000000e+00 : f32
    %9 = vector.broadcast %cst_3 : f32 to vector<8x1x8xf32>
    %10 = tpu.concatenate %8, %9 in 1 : vector<8x15x8xf32>, vector<8x1x8xf32> -> vector<8x16x8xf32>
    %11 = vector.extract_strided_slice %1 {offsets = [0, 2, 0], sizes = [8, 14, 8], strides = [1, 1, 1]} : vector<8x16x8xf32> to vector<8x14x8xf32>
    %cst_4 = arith.constant 0.000000e+00 : f32
    %12 = vector.broadcast %cst_4 : f32 to vector<8x2x8xf32>
    %13 = tpu.concatenate %11, %12 in 1 : vector<8x14x8xf32>, vector<8x2x8xf32> -> vector<8x16x8xf32>
    %14 = tpu.concatenate %4, %7, %1, %10, %13 in 2 : vector<8x16x8xf32>, vector<8x16x8xf32>, vector<8x16x8xf32>, vector<8x16x8xf32>, vector<8x16x8xf32> -> vector<8x16x40xf32>
    %15 = vector.shape_cast %14 : vector<8x16x40xf32> to vector<128x40xf32>
    %16 = arith.truncf %15 : vector<128x40xf32> to vector<128x40xbf16>
    %c0_5 = arith.constant 0 : index
    %c0_6 = arith.constant 0 : index
    %17 = vector.load %arg2[%c0_5, %c0_6] : memref<40x32xbf16, #tpu.memory_space<vmem>>, vector<40x32xbf16>
    %cst_7 = arith.constant dense<0.000000e+00> : vector<128x32xf32>
    %18 = tpu.matmul %16, %17, %cst_7 {dimension_numbers = #tpu.dot_dimension_numbers<[1], [0], [0], [1], [0, 0, 1, 1], [], []>} : vector<128x40xbf16>, vector<40x32xbf16>, vector<128x32xf32> -> vector<128x32xf32>
    %c0_8 = arith.constant 0 : index
    %c0_9 = arith.constant 0 : index
    %19 = vector.load %arg3[%c0_8, %c0_9] : memref<1x32xf32, #tpu.memory_space<vmem>>, vector<1x32xf32>
    %20 = vector.broadcast %19 : vector<1x32xf32> to vector<128x32xf32>
    %21 = arith.addf %18, %20 : vector<128x32xf32>
    %cst_10 = arith.constant dense<0xFF800000> : vector<128xf32>
    %22 = vector.multi_reduction <maximumf>, %21, %cst_10 [1] : vector<128x32xf32> to vector<128xf32>
    %23 = vector.shape_cast %22 : vector<128xf32> to vector<128x1xf32>
    %c0_11 = arith.constant 0 : index
    %c0_12 = arith.constant 0 : index
    %24 = vector.load %arg4[%c0_11, %c0_12] : memref<8x128xf32, #tpu.memory_space<vmem>>, vector<8x128xf32>
    %cst_13 = arith.constant dense<0.000000e+00> : vector<8x1xf32>
    %25 = tpu.matmul %24, %23, %cst_13 {dimension_numbers = #tpu.dot_dimension_numbers<[1], [0], [0], [1], [0, 0, 1, 1], [], []>} : vector<8x128xf32>, vector<128x1xf32>, vector<8x1xf32> -> vector<8x1xf32>
    %c0_14 = arith.constant 0 : index
    %c0_15 = arith.constant 0 : index
    %26 = vector.load %arg5[%c0_14, %c0_15] : memref<1x1xf32, #tpu.memory_space<vmem>>, vector<1x1xf32>
    %27 = vector.broadcast %26 : vector<1x1xf32> to vector<8x1xf32>
    %28 = arith.addf %25, %27 : vector<8x1xf32>
    %cst_16 = arith.constant 0.000000e+00 : f32
    %29 = vector.broadcast %cst_16 : f32 to vector<8x1xf32>
    %30 = arith.subf %29, %28 : vector<8x1xf32>
    %31 = math.exp %30 : vector<8x1xf32>
    %cst_17 = arith.constant 1.000000e+00 : f32
    %32 = vector.broadcast %cst_17 : f32 to vector<8x1xf32>
    %33 = arith.addf %32, %31 : vector<8x1xf32>
    %cst_18 = arith.constant 1.000000e+00 : f32
    %34 = vector.broadcast %cst_18 : f32 to vector<8x1xf32>
    %35 = arith.divf %34, %33 : vector<8x1xf32>
    %c0_19 = arith.constant 0 : index
    %c0_20 = arith.constant 0 : index
    %36 = vector.load %arg6[%c0_19, %c0_20] : memref<8x1xf32, #tpu.memory_space<vmem>>, vector<8x1xf32>
    tpu.vector_store %arg6[%c0_19, %c0_20], %35 {strides = array<i32>} : memref<8x1xf32, #tpu.memory_space<vmem>>, vector<8x1xf32>,
    return
  }
  func.func @transform_0(%arg0: i32) -> (i32, i32, i32) {
    %c0_i32 = arith.constant 0 : i32
    %c0_i32_0 = arith.constant 0 : i32
    %c0_i32_1 = arith.constant 0 : i32
    return %arg0, %c0_i32, %c0_i32_0 : i32, i32, i32
  }
  func.func @transform_1(%arg0: i32) -> (i32, i32) {
    %c0_i32 = arith.constant 0 : i32
    %c0_i32_0 = arith.constant 0 : i32
    %c0_i32_1 = arith.constant 0 : i32
    return %c0_i32, %c0_i32_0 : i32, i32
  }
  func.func @transform_2(%arg0: i32) -> (i32, i32) {
    %c0_i32 = arith.constant 0 : i32
    %c0_i32_0 = arith.constant 0 : i32
    %c0_i32_1 = arith.constant 0 : i32
    return %c0_i32, %c0_i32_0 : i32, i32
  }
  func.func @transform_3(%arg0: i32) -> (i32, i32) {
    %c0_i32 = arith.constant 0 : i32
    %c0_i32_0 = arith.constant 0 : i32
    %c0_i32_1 = arith.constant 0 : i32
    return %c0_i32, %c0_i32_0 : i32, i32
  }
  func.func @transform_4(%arg0: i32) -> (i32, i32) {
    %c0_i32 = arith.constant 0 : i32
    %c0_i32_0 = arith.constant 0 : i32
    %c0_i32_1 = arith.constant 0 : i32
    return %c0_i32, %c0_i32_0 : i32, i32
  }
  func.func @transform_5(%arg0: i32) -> (i32, i32) {
    %c0_i32 = arith.constant 0 : i32
    %c0_i32_0 = arith.constant 0 : i32
    return %arg0, %c0_i32 : i32, i32
  }
}

</mosaic_0001>

<llo_original>
// kernel: forward.1
$region0: #{forward.1}
  #allocation0 [shape = 'u32[]', space=smem, size = 0x4, offset = 0x4, fixed_abs, tag = 'smem constant byte address 0x4 - core index']
  #allocation1 [shape = 'u32[72,128]{1,0:T(1,128)}', space=vmem, size = 0x9000, scoped, tag = 'internal scratch']
  #allocation2 [shape = 'f32[1,1]{1,0:T(1,128)S(1)}', space=vmem, size = 0x200, scoped, tag = 'scoped memory for forward.1']
  %s0 = inlined_call_operand.vmem [shape: bf16[16,16,8], index: 0, kind: input, shape index: {}]
  %s1 = inlined_call_operand.vmem [shape: bf16[40,32], index: 1, kind: input, shape index: {}]
  %s2 = inlined_call_operand.vmem [shape: f32[1,32], index: 2, kind: input, shape index: {}]
  %s3 = inlined_call_operand.vmem [shape: f32[8,128], index: 3, kind: input, shape index: {}]
  %s4 = inlined_call_operand.<no memory space> [shape: f32[1,1], index: 4, kind: input, shape index: {}]
  %s5 = inlined_call_operand.vmem [shape: f32[16,1], index: 5, kind: output, shape index: {}]
  %s6 = sld [smem:[#allocation0]]
  $region53: #{forward.1} parent=0
    _
  %s8 = ssub.s32 1, %s6
  %s9 = scalar_select 0, %s8, %s6
  %v10 = vstv %s4
  %11 = vst [vmem:[#allocation2] sm:$0x1] %v10
  loop: start=0, step=1, limit=4
  $region2: #{forward.1} parent=0 // loop_pre_header
    _
  $region3: #{forward.1} parent=0 // loop_header
    %s13 = sphi 0, %s17
    %p14 = scmp.ge.s32.totalorder %s13, 4
    %s23 = sphi 0, %s25
    %s26 = sphi 0, %s23
    %s27 = sphi 0, %s26
    %s43 = sphi 0, %s27
    %s47 = sphi 0, %s47
    %s49 = sphi 0, %s47
    %s50 = sphi 0, %s49
    %s64 = sphi 0, %s50
    %s68 = sphi 0, %s68
    %s70 = sphi 0, %s68
    %s71 = sphi 0, %s70
    %s85 = sphi 0, %s71
    %s89 = sphi 0, %s89
    %s91 = sphi 0, %s89
    %s92 = sphi 0, %s91
    %s106 = sphi 0, %s92
    %s110 = sphi 0, %s110
    %s112 = sphi 0, %s110
    %s113 = sphi 0, %s112
    %s127 = sphi 0, %s113
    %s133 = sphi 0, %s135
    %s136 = sphi 0, %s133
    %s137 = sphi 0, %s136
    %s153 = sphi 0, %s137
  $region4: #{forward.1} parent=0 // loop_header_branch
    %16 = sbr.rel (%p14) target = $region8
  $region5: #{forward.1} parent=0 // loop_body
    %s18 = ssub.s32 %s13, 1
    %s19 = ssub.s32 %s13, 2
    %s20 = sadd.s32 %s13, 1
    %s21 = ssub.s32 %s13, %s20
    %p22 = scmp.eq.s32.totalorder %s21, 0
    %s24 = sadd.s32 %s23, 1
    %s25 = scalar_select %p22, %s23, %s24
    %p28 = pneg %p22
    %p29 = scmp.eq.s32.totalorder %s13, 1
    %p30 = por %p28, %p29
    %p31 = scmp.ne.s32.totalorder %s23, %s26
    %p32 = scmp.eq.s32.totalorder %s13, 0
    %p33 = por %p31, %p32
    %p34 = scmp.ne.s32.totalorder %s23, %s26
    %p35 = scmp.eq.s32.totalorder %s18, 1
    %p36 = por %p34, %p35
    %p37 = scmp.ne.s32.totalorder %s26, %s27
    %p38 = scmp.eq.s32.totalorder %s18, 0
    %p39 = por %p37, %p38
    %p40 = scmp.ne.s32.totalorder %s26, %s27
    %p41 = scmp.eq.s32.totalorder %s19, 1
    %p42 = por %p40, %p41
    %p44 = scmp.ne.s32.totalorder %s27, %s43
    %p45 = scmp.eq.s32.totalorder %s19, 0
    %p46 = por %p44, %p45
    %s48 = sadd.s32 %s47, 1
    %p51 = scmp.eq.s32.totalorder %s13, 1
    %p52 = scmp.ne.s32.totalorder %s47, %s49
    %p53 = scmp.eq.s32.totalorder %s13, 0
    %p54 = por %p52, %p53
    %p55 = scmp.ne.s32.totalorder %s47, %s49
    %p56 = scmp.eq.s32.totalorder %s18, 1
    %p57 = por %p55, %p56
    %p58 = scmp.ne.s32.totalorder %s49, %s50
    %p59 = scmp.eq.s32.totalorder %s18, 0
    %p60 = por %p58, %p59
    %p61 = scmp.ne.s32.totalorder %s49, %s50
    %p62 = scmp.eq.s32.totalorder %s19, 1
    %p63 = por %p61, %p62
    %p65 = scmp.ne.s32.totalorder %s50, %s64
    %p66 = scmp.eq.s32.totalorder %s19, 0
    %p67 = por %p65, %p66
    %s69 = sadd.s32 %s68, 1
    %p72 = scmp.eq.s32.totalorder %s13, 1
    %p73 = scmp.ne.s32.totalorder %s68, %s70
    %p74 = scmp.eq.s32.totalorder %s13, 0
    %p75 = por %p73, %p74
    %p76 = scmp.ne.s32.totalorder %s68, %s70
    %p77 = scmp.eq.s32.totalorder %s18, 1
    %p78 = por %p76, %p77
    %p79 = scmp.ne.s32.totalorder %s70, %s71
    %p80 = scmp.eq.s32.totalorder %s18, 0
    %p81 = por %p79, %p80
    %p82 = scmp.ne.s32.totalorder %s70, %s71
    %p83 = scmp.eq.s32.totalorder %s19, 1
    %p84 = por %p82, %p83
    %p86 = scmp.ne.s32.totalorder %s71, %s85
    %p87 = scmp.eq.s32.totalorder %s19, 0
    %p88 = por %p86, %p87
    %s90 = sadd.s32 %s89, 1
    %p93 = scmp.eq.s32.totalorder %s13, 1
    %p94 = scmp.ne.s32.totalorder %s89, %s91
    %p95 = scmp.eq.s32.totalorder %s13, 0
    %p96 = por %p94, %p95
    %p97 = scmp.ne.s32.totalorder %s89, %s91
    %p98 = scmp.eq.s32.totalorder %s18, 1
    %p99 = por %p97, %p98
    %p100 = scmp.ne.s32.totalorder %s91, %s92
    %p101 = scmp.eq.s32.totalorder %s18, 0
    %p102 = por %p100, %p101
    %p103 = scmp.ne.s32.totalorder %s91, %s92
    %p104 = scmp.eq.s32.totalorder %s19, 1
    %p105 = por %p103, %p104
    %p107 = scmp.ne.s32.totalorder %s92, %s106
    %p108 = scmp.eq.s32.totalorder %s19, 0
    %p109 = por %p107, %p108
    %s111 = sadd.s32 %s110, 1
    %p114 = scmp.eq.s32.totalorder %s13, 1
    %p115 = scmp.ne.s32.totalorder %s110, %s112
    %p116 = scmp.eq.s32.totalorder %s13, 0
    %p117 = por %p115, %p116
    %p118 = scmp.ne.s32.totalorder %s110, %s112
    %p119 = scmp.eq.s32.totalorder %s18, 1
    %p120 = por %p118, %p119
    %p121 = scmp.ne.s32.totalorder %s112, %s113
    %p122 = scmp.eq.s32.totalorder %s18, 0
    %p123 = por %p121, %p122
    %p124 = scmp.ne.s32.totalorder %s112, %s113
    %p125 = scmp.eq.s32.totalorder %s19, 1
    %p126 = por %p124, %p125
    %p128 = scmp.ne.s32.totalorder %s113, %s127
    %p129 = scmp.eq.s32.totalorder %s19, 0
    %p130 = por %p128, %p129
    %s131 = ssub.s32 %s13, %s20
    %p132 = scmp.eq.s32.totalorder %s131, 0
    %s134 = sadd.s32 %s133, 1
    %s135 = scalar_select %p132, %s133, %s134
    %p138 = pneg %p132
    %p139 = scmp.eq.s32.totalorder %s13, 1
    %p140 = por %p138, %p139
    %p141 = scmp.ne.s32.totalorder %s133, %s136
    %p142 = scmp.eq.s32.totalorder %s13, 0
    %p143 = por %p141, %p142
    %p144 = scmp.ne.s32.totalorder %s133, %s136
    %p145 = scmp.eq.s32.totalorder %s18, 1
    %p146 = por %p144, %p145
    %p147 = scmp.ne.s32.totalorder %s136, %s137
    %p148 = scmp.eq.s32.totalorder %s18, 0
    %p149 = por %p147, %p148
    %p150 = scmp.ne.s32.totalorder %s136, %s137
    %p151 = scmp.eq.s32.totalorder %s19, 1
    %p152 = por %p150, %p151
    %p154 = scmp.ne.s32.totalorder %s137, %s153
    %p155 = scmp.eq.s32.totalorder %s19, 0
    %p156 = por %p154, %p155
    %p157 = scmp.le.s32.totalorder 1, %s13
    %p158 = scmp.lt.s32.totalorder %s13, 3
    %p159 = pnand %p157, %p158
    %p160 = pneg %p159
    // Predicated region
    $region9: #{forward.1} parent=5 // pred_check
      _
    $region10: #{forward.1} parent=5 // pred_check_branch
      %162 = sbr.rel (%p159) target = $region12
    $region11: #{forward.1} parent=5 // pred_region
      %s163 = ssub.s32 %s13, 1
      // Predicated region
      $region13: #{forward.1} parent=11 // pred_check
        %p164 = pneg %p60
      $region14: #{forward.1} parent=11 // pred_check_branch
        %166 = sbr.rel (%p164) target = $region16
      $region15: #{forward.1} parent=11 // pred_region
        _
      $region16: #{forward.1} parent=11 // pred_fallthru
        _
      // Predicated region
      $region17: #{forward.1} parent=11 // pred_check
        %p167 = pneg %p81
      $region18: #{forward.1} parent=11 // pred_check_branch
        %169 = sbr.rel (%p167) target = $region20
      $region19: #{forward.1} parent=11 // pred_region
        _
      $region20: #{forward.1} parent=11 // pred_fallthru
        _
      // Predicated region
      $region21: #{forward.1} parent=11 // pred_check
        %p170 = pneg %p102
      $region22: #{forward.1} parent=11 // pred_check_branch
        %172 = sbr.rel (%p170) target = $region24
      $region23: #{forward.1} parent=11 // pred_region
        _
      $region24: #{forward.1} parent=11 // pred_fallthru
        _
      // Predicated region
      $region25: #{forward.1} parent=11 // pred_check
        %p173 = pneg %p123
      $region26: #{forward.1} parent=11 // pred_check_branch
        %175 = sbr.rel (%p173) target = $region28
      $region27: #{forward.1} parent=11 // pred_region
        _
      $region28: #{forward.1} parent=11 // pred_fallthru
        _
    $region12: #{forward.1} parent=5 // pred_fallthru
      _
    %p176 = scmp.lt.s32.totalorder %s13, 2
    // Predicated region
    $region29: #{forward.1} parent=5 // pred_check
      %p177 = pneg %p176
    $region30: #{forward.1} parent=5 // pred_check_branch
      %179 = sbr.rel (%p177) target = $region32
    $region31: #{forward.1} parent=5 // pred_region
      // Predicated region
      $region33: #{forward.1} parent=31 // pred_check
        %p180 = pneg %p33
      $region34: #{forward.1} parent=31 // pred_check_branch
        %182 = sbr.rel (%p180) target = $region36
      $region35: #{forward.1} parent=31 // pred_region
        %s183 = smul.u32 8, %s13
        %p184 = scmp.lt.s32.totalorder %s183, 15
        %s185 = scalar_select %p184, %s183, 15
        %s186 = smul.addr %s185, 2
        %s187 = smul.addr %s186, 4
        %s188 = scalar_lea.vmem %s0, %s187
        %s189 = smul.u32 8, %s13
      $region36: #{forward.1} parent=31 // pred_fallthru
        _
    $region32: #{forward.1} parent=5 // pred_fallthru
      _
    %p190 = scmp.le.s32.totalorder 1, %s13
    %p191 = scmp.lt.s32.totalorder %s13, 3
    %p192 = pnand %p190, %p191
    %p193 = pneg %p192
    // Predicated region
    $region37: #{forward.1} parent=5 // pred_check
      _
    $region38: #{forward.1} parent=5 // pred_check_branch
      %195 = sbr.rel (%p192) target = $region40
    $region39: #{forward.1} parent=5 // pred_region
      %s196 = ssub.s32 %s13, 1
      %s197 = smul.u32 8, %s18
      %p198 = scmp.lt.s32.totalorder %s197, 15
      %s199 = scalar_select %p198, %s197, 15
      %s200 = smul.addr %s199, 2
      %s201 = smul.addr %s200, 4
      %s202 = scalar_lea.vmem %s0, %s201
      %p203 = pneg %p39
      %p204 = pneg %p36
      %p205 = pneg %p60
      %p206 = pneg %p57
      %p207 = pneg %p81
      %p208 = pneg %p78
      %p209 = pneg %p102
      %p210 = pneg %p99
      %p211 = pneg %p123
      %p212 = pneg %p120
      %p213 = pneg %p149
      %p214 = pneg %p146
      %p215 = scmp.lt.s32.totalorder %s18, 1
      %s216 = scalar_select %p215, %s18, 1
      %s217 = smul.addr %s216, 8
      %s218 = scalar_lea.vmem %s5, %s217
      %s219 = smul.u32 8, %s18
      %p220 = scmp.lt.s32.totalorder %s219, 15
      %s221 = scalar_select %p220, %s219, 15
      %s222 = smul.addr %s221, 2
      %s223 = smul.addr %s222, 4
      %s224 = scalar_lea.vmem %s0, %s223
      %s225 = smul.u32 8, %s18
      %p226 = scmp.lt.s32.totalorder %s18, 1
      %s227 = scalar_select %p226, %s18, 1
      %s228 = smul.addr %s227, 8
      %s229 = scalar_lea.vmem %s5, %s228
      %v231 = vld [vmem:[%s224] sm:$0xf]
      %v232 = vld [vmem:[%s224 + $0x4] sm:$0xf]
      %v233 = vld [vmem:[%s224 + $0x8] sm:$0xf]
      %v234 = vld [vmem:[%s224 + $0xc] sm:$0xf]
      %v235 = vld [vmem:[%s224 + $0x10] sm:$0xf]
      %v236 = vld [vmem:[%s224 + $0x14] sm:$0xf]
      %v237 = vld [vmem:[%s224 + $0x18] sm:$0xf]
      %v238 = vld [vmem:[%s224 + $0x1c] sm:$0xf]
      %v239 = vld [vmem:[%s224 + $0x20] sm:$0xf]
      %v240 = vld [vmem:[%s224 + $0x24] sm:$0xf]
      %v241 = vld [vmem:[%s224 + $0x28] sm:$0xf]
      %v242 = vld [vmem:[%s224 + $0x2c] sm:$0xf]
      %v243 = vld [vmem:[%s224 + $0x30] sm:$0xf]
      %v244 = vld [vmem:[%s224 + $0x34] sm:$0xf]
      %v245 = vld [vmem:[%s224 + $0x38] sm:$0xf]
      %v246 = vld [vmem:[%s224 + $0x3c] sm:$0xf]
      %v247 = vunpack.c.l.bf16 %v231
      %v248 = vunpack.c.l.bf16 %v232
      %v249 = vunpack.c.l.bf16 %v233
      %v250 = vunpack.c.l.bf16 %v234
      %v251 = vunpack.c.l.bf16 %v235
      %v252 = vunpack.c.l.bf16 %v236
      %v253 = vunpack.c.l.bf16 %v237
      %v254 = vunpack.c.l.bf16 %v238
      %v255 = vunpack.c.l.bf16 %v239
      %v256 = vunpack.c.l.bf16 %v240
      %v257 = vunpack.c.l.bf16 %v241
      %v258 = vunpack.c.l.bf16 %v242
      %v259 = vunpack.c.l.bf16 %v243
      %v260 = vunpack.c.l.bf16 %v244
      %v261 = vunpack.c.l.bf16 %v245
      %v262 = vunpack.c.l.bf16 %v246
      %vm279 = vcmask 1041408
      %v280 = vrot.slane %v247, 6
      %v281 = vrot.slane %v248, 6
      %v282 = vsel %vm279, %v280, %v281
      %v283 = vrot.slane %v249, 6
      %v284 = vrot.slane %v250, 6
      %v285 = vsel %vm279, %v283, %v284
      %v286 = vrot.slane %v251, 6
      %v287 = vrot.slane %v252, 6
      %v288 = vsel %vm279, %v286, %v287
      %v289 = vrot.slane %v253, 6
      %v290 = vrot.slane %v254, 6
      %v291 = vsel %vm279, %v289, %v290
      %v292 = vrot.slane %v255, 6
      %v293 = vrot.slane %v256, 6
      %v294 = vsel %vm279, %v292, %v293
      %v295 = vrot.slane %v257, 6
      %v296 = vrot.slane %v258, 6
      %v297 = vsel %vm279, %v295, %v296
      %v298 = vrot.slane %v259, 6
      %v299 = vrot.slane %v260, 6
      %v300 = vsel %vm279, %v298, %v299
      %v301 = vrot.slane %v261, 6
      %v302 = vrot.slane %v262, 6
      %v303 = vsel %vm279, %v301, %v302
      %v320 = vsel %vm279, 0.0, %v280
      %v321 = vsel %vm279, 0.0, %v283
      %v322 = vsel %vm279, 0.0, %v286
      %v323 = vsel %vm279, 0.0, %v289
      %v324 = vsel %vm279, 0.0, %v292
      %v325 = vsel %vm279, 0.0, %v295
      %v326 = vsel %vm279, 0.0, %v298
      %v327 = vsel %vm279, 0.0, %v301
      %vm328 = vcmask 1040384
      %v329 = vrot.slane %v247, 7
      %v330 = vrot.slane %v248, 7
      %v331 = vsel %vm328, %v329, %v330
      %v332 = vrot.slane %v249, 7
      %v333 = vrot.slane %v250, 7
      %v334 = vsel %vm328, %v332, %v333
      %v335 = vrot.slane %v251, 7
      %v336 = vrot.slane %v252, 7
      %v337 = vsel %vm328, %v335, %v336
      %v338 = vrot.slane %v253, 7
      %v339 = vrot.slane %v254, 7
      %v340 = vsel %vm328, %v338, %v339
      %v341 = vrot.slane %v255, 7
      %v342 = vrot.slane %v256, 7
      %v343 = vsel %vm328, %v341, %v342
      %v344 = vrot.slane %v257, 7
      %v345 = vrot.slane %v258, 7
      %v346 = vsel %vm328, %v344, %v345
      %v347 = vrot.slane %v259, 7
      %v348 = vrot.slane %v260, 7
      %v349 = vsel %vm328, %v347, %v348
      %v350 = vrot.slane %v261, 7
      %v351 = vrot.slane %v262, 7
      %v352 = vsel %vm328, %v350, %v351
      %v361 = vsel %vm328, 0.0, %v329
      %v362 = vsel %vm328, 0.0, %v332
      %v363 = vsel %vm328, 0.0, %v335
      %v364 = vsel %vm328, 0.0, %v338
      %v365 = vsel %vm328, 0.0, %v341
      %v366 = vsel %vm328, 0.0, %v344
      %v367 = vsel %vm328, 0.0, %v347
      %v368 = vsel %vm328, 0.0, %v350
      %vm369 = vcmask 1046528
      %v370 = vrot.slane %v247, 1
      %v371 = vrot.slane %v248, 1
      %v372 = vsel %vm369, %v370, %v371
      %v373 = vrot.slane %v249, 1
      %v374 = vrot.slane %v250, 1
      %v375 = vsel %vm369, %v373, %v374
      %v376 = vrot.slane %v251, 1
      %v377 = vrot.slane %v252, 1
      %v378 = vsel %vm369, %v376, %v377
      %v379 = vrot.slane %v253, 1
      %v380 = vrot.slane %v254, 1
      %v381 = vsel %vm369, %v379, %v380
      %v382 = vrot.slane %v255, 1
      %v383 = vrot.slane %v256, 1
      %v384 = vsel %vm369, %v382, %v383
      %v385 = vrot.slane %v257, 1
      %v386 = vrot.slane %v258, 1
      %v387 = vsel %vm369, %v385, %v386
      %v388 = vrot.slane %v259, 1
      %v389 = vrot.slane %v260, 1
      %v390 = vsel %vm369, %v388, %v389
      %v391 = vrot.slane %v261, 1
      %v392 = vrot.slane %v262, 1
      %v393 = vsel %vm369, %v391, %v392
      %v402 = vsel %vm369, %v371, 0.0
      %v403 = vsel %vm369, %v374, 0.0
      %v404 = vsel %vm369, %v377, 0.0
      %v405 = vsel %vm369, %v380, 0.0
      %v406 = vsel %vm369, %v383, 0.0
      %v407 = vsel %vm369, %v386, 0.0
      %v408 = vsel %vm369, %v389, 0.0
      %v409 = vsel %vm369, %v392, 0.0
      %vm410 = vcmask 1045504
      %v411 = vrot.slane %v247, 2
      %v412 = vrot.slane %v248, 2
      %v413 = vsel %vm410, %v411, %v412
      %v414 = vrot.slane %v249, 2
      %v415 = vrot.slane %v250, 2
      %v416 = vsel %vm410, %v414, %v415
      %v417 = vrot.slane %v251, 2
      %v418 = vrot.slane %v252, 2
      %v419 = vsel %vm410, %v417, %v418
      %v420 = vrot.slane %v253, 2
      %v421 = vrot.slane %v254, 2
      %v422 = vsel %vm410, %v420, %v421
      %v423 = vrot.slane %v255, 2
      %v424 = vrot.slane %v256, 2
      %v425 = vsel %vm410, %v423, %v424
      %v426 = vrot.slane %v257, 2
      %v427 = vrot.slane %v258, 2
      %v428 = vsel %vm410, %v426, %v427
      %v429 = vrot.slane %v259, 2
      %v430 = vrot.slane %v260, 2
      %v431 = vsel %vm410, %v429, %v430
      %v432 = vrot.slane %v261, 2
      %v433 = vrot.slane %v262, 2
      %v434 = vsel %vm410, %v432, %v433
      %v443 = vsel %vm410, %v412, 0.0
      %v444 = vsel %vm410, %v415, 0.0
      %v445 = vsel %vm410, %v418, 0.0
      %v446 = vsel %vm410, %v421, 0.0
      %v447 = vsel %vm410, %v424, 0.0
      %v448 = vsel %vm410, %v427, 0.0
      %v449 = vsel %vm410, %v430, 0.0
      %v450 = vsel %vm410, %v433, 0.0
      %459 = vrot.lane.b32.xlu0 %v361, 8
      %v460 = vpop.permute.xlu0 %459
      %461 = vrot.lane.b32.xlu0 %v331, 8
      %v462 = vpop.permute.xlu0 %461
      %463 = vrot.lane.b32.xlu0 %v362, 8
      %v464 = vpop.permute.xlu0 %463
      %465 = vrot.lane.b32.xlu0 %v334, 8
      %v466 = vpop.permute.xlu0 %465
      %467 = vrot.lane.b32.xlu0 %v363, 8
      %v468 = vpop.permute.xlu0 %467
      %469 = vrot.lane.b32.xlu0 %v337, 8
      %v470 = vpop.permute.xlu0 %469
      %471 = vrot.lane.b32.xlu0 %v364, 8
      %v472 = vpop.permute.xlu0 %471
      %473 = vrot.lane.b32.xlu0 %v340, 8
      %v474 = vpop.permute.xlu0 %473
      %475 = vrot.lane.b32.xlu0 %v365, 8
      %v476 = vpop.permute.xlu0 %475
      %477 = vrot.lane.b32.xlu0 %v343, 8
      %v478 = vpop.permute.xlu0 %477
      %479 = vrot.lane.b32.xlu0 %v366, 8
      %v480 = vpop.permute.xlu0 %479
      %481 = vrot.lane.b32.xlu0 %v346, 8
      %v482 = vpop.permute.xlu0 %481
      %483 = vrot.lane.b32.xlu0 %v367, 8
      %v484 = vpop.permute.xlu0 %483
      %485 = vrot.lane.b32.xlu0 %v349, 8
      %v486 = vpop.permute.xlu0 %485
      %487 = vrot.lane.b32.xlu0 %v368, 8
      %v488 = vpop.permute.xlu0 %487
      %489 = vrot.lane.b32.xlu0 %v352, 8
      %v490 = vpop.permute.xlu0 %489
      %507 = vrot.lane.b32.xlu0 %v247, 16
      %v508 = vpop.permute.xlu0 %507
      %509 = vrot.lane.b32.xlu0 %v248, 16
      %v510 = vpop.permute.xlu0 %509
      %511 = vrot.lane.b32.xlu0 %v249, 16
      %v512 = vpop.permute.xlu0 %511
      %513 = vrot.lane.b32.xlu0 %v250, 16
      %v514 = vpop.permute.xlu0 %513
      %515 = vrot.lane.b32.xlu0 %v251, 16
      %v516 = vpop.permute.xlu0 %515
      %517 = vrot.lane.b32.xlu0 %v252, 16
      %v518 = vpop.permute.xlu0 %517
      %519 = vrot.lane.b32.xlu0 %v253, 16
      %v520 = vpop.permute.xlu0 %519
      %521 = vrot.lane.b32.xlu0 %v254, 16
      %v522 = vpop.permute.xlu0 %521
      %523 = vrot.lane.b32.xlu0 %v255, 16
      %v524 = vpop.permute.xlu0 %523
      %525 = vrot.lane.b32.xlu0 %v256, 16
      %v526 = vpop.permute.xlu0 %525
      %527 = vrot.lane.b32.xlu0 %v257, 16
      %v528 = vpop.permute.xlu0 %527
      %529 = vrot.lane.b32.xlu0 %v258, 16
      %v530 = vpop.permute.xlu0 %529
      %531 = vrot.lane.b32.xlu0 %v259, 16
      %v532 = vpop.permute.xlu0 %531
      %533 = vrot.lane.b32.xlu0 %v260, 16
      %v534 = vpop.permute.xlu0 %533
      %535 = vrot.lane.b32.xlu0 %v261, 16
      %v536 = vpop.permute.xlu0 %535
      %537 = vrot.lane.b32.xlu0 %v262, 16
      %v538 = vpop.permute.xlu0 %537
      %563 = vrot.lane.b32.xlu0 %v372, 24
      %v564 = vpop.permute.xlu0 %563
      %565 = vrot.lane.b32.xlu0 %v402, 24
      %v566 = vpop.permute.xlu0 %565
      %567 = vrot.lane.b32.xlu0 %v375, 24
      %v568 = vpop.permute.xlu0 %567
      %569 = vrot.lane.b32.xlu0 %v403, 24
      %v570 = vpop.permute.xlu0 %569
      %571 = vrot.lane.b32.xlu0 %v378, 24
      %v572 = vpop.permute.xlu0 %571
      %573 = vrot.lane.b32.xlu0 %v404, 24
      %v574 = vpop.permute.xlu0 %573
      %575 = vrot.lane.b32.xlu0 %v381, 24
      %v576 = vpop.permute.xlu0 %575
      %577 = vrot.lane.b32.xlu0 %v405, 24
      %v578 = vpop.permute.xlu0 %577
      %579 = vrot.lane.b32.xlu0 %v384, 24
      %v580 = vpop.permute.xlu0 %579
      %581 = vrot.lane.b32.xlu0 %v406, 24
      %v582 = vpop.permute.xlu0 %581
      %583 = vrot.lane.b32.xlu0 %v387, 24
      %v584 = vpop.permute.xlu0 %583
      %585 = vrot.lane.b32.xlu0 %v407, 24
      %v586 = vpop.permute.xlu0 %585
      %587 = vrot.lane.b32.xlu0 %v390, 24
      %v588 = vpop.permute.xlu0 %587
      %589 = vrot.lane.b32.xlu0 %v408, 24
      %v590 = vpop.permute.xlu0 %589
      %591 = vrot.lane.b32.xlu0 %v393, 24
      %v592 = vpop.permute.xlu0 %591
      %593 = vrot.lane.b32.xlu0 %v409, 24
      %v594 = vpop.permute.xlu0 %593
      %619 = vrot.lane.b32.xlu0 %v413, 32
      %v620 = vpop.permute.xlu0 %619
      %621 = vrot.lane.b32.xlu0 %v443, 32
      %v622 = vpop.permute.xlu0 %621
      %623 = vrot.lane.b32.xlu0 %v416, 32
      %v624 = vpop.permute.xlu0 %623
      %625 = vrot.lane.b32.xlu0 %v444, 32
      %v626 = vpop.permute.xlu0 %625
      %627 = vrot.lane.b32.xlu0 %v419, 32
      %v628 = vpop.permute.xlu0 %627
      %629 = vrot.lane.b32.xlu0 %v445, 32
      %v630 = vpop.permute.xlu0 %629
      %631 = vrot.lane.b32.xlu0 %v422, 32
      %v632 = vpop.permute.xlu0 %631
      %633 = vrot.lane.b32.xlu0 %v446, 32
      %v634 = vpop.permute.xlu0 %633
      %635 = vrot.lane.b32.xlu0 %v425, 32
      %v636 = vpop.permute.xlu0 %635
      %637 = vrot.lane.b32.xlu0 %v447, 32
      %v638 = vpop.permute.xlu0 %637
      %639 = vrot.lane.b32.xlu0 %v428, 32
      %v640 = vpop.permute.xlu0 %639
      %641 = vrot.lane.b32.xlu0 %v448, 32
      %v642 = vpop.permute.xlu0 %641
      %643 = vrot.lane.b32.xlu0 %v431, 32
      %v644 = vpop.permute.xlu0 %643
      %645 = vrot.lane.b32.xlu0 %v449, 32
      %v646 = vpop.permute.xlu0 %645
      %647 = vrot.lane.b32.xlu0 %v434, 32
      %v648 = vpop.permute.xlu0 %647
      %649 = vrot.lane.b32.xlu0 %v450, 32
      %v650 = vpop.permute.xlu0 %649
      %vm667 = vcmask 64512
      %v668 = vsel %vm667, %v320, %v460
      %v669 = vsel %vm667, %v282, %v462
      %v670 = vsel %vm667, %v321, %v464
      %v671 = vsel %vm667, %v285, %v466
      %v672 = vsel %vm667, %v322, %v468
      %v673 = vsel %vm667, %v288, %v470
      %v674 = vsel %vm667, %v323, %v472
      %v675 = vsel %vm667, %v291, %v474
      %v676 = vsel %vm667, %v324, %v476
      %v677 = vsel %vm667, %v294, %v478
      %v678 = vsel %vm667, %v325, %v480
      %v679 = vsel %vm667, %v297, %v482
      %v680 = vsel %vm667, %v326, %v484
      %v681 = vsel %vm667, %v300, %v486
      %v682 = vsel %vm667, %v327, %v488
      %v683 = vsel %vm667, %v303, %v490
      %vm684 = vcmask 130048
      %v685 = vsel %vm684, %v668, %v508
      %v686 = vsel %vm684, %v669, %v510
      %v687 = vsel %vm684, %v670, %v512
      %v688 = vsel %vm684, %v671, %v514
      %v689 = vsel %vm684, %v672, %v516
      %v690 = vsel %vm684, %v673, %v518
      %v691 = vsel %vm684, %v674, %v520
      %v692 = vsel %vm684, %v675, %v522
      %v693 = vsel %vm684, %v676, %v524
      %v694 = vsel %vm684, %v677, %v526
      %v695 = vsel %vm684, %v678, %v528
      %v696 = vsel %vm684, %v679, %v530
      %v697 = vsel %vm684, %v680, %v532
      %v698 = vsel %vm684, %v681, %v534
      %v699 = vsel %vm684, %v682, %v536
      %v700 = vsel %vm684, %v683, %v538
      %vm701 = vcmask 195584
      %v702 = vsel %vm701, %v685, %v564
      %v703 = vsel %vm701, %v686, %v566
      %v704 = vsel %vm701, %v687, %v568
      %v705 = vsel %vm701, %v688, %v570
      %v706 = vsel %vm701, %v689, %v572
      %v707 = vsel %vm701, %v690, %v574
      %v708 = vsel %vm701, %v691, %v576
      %v709 = vsel %vm701, %v692, %v578
      %v710 = vsel %vm701, %v693, %v580
      %v711 = vsel %vm701, %v694, %v582
      %v712 = vsel %vm701, %v695, %v584
      %v713 = vsel %vm701, %v696, %v586
      %v714 = vsel %vm701, %v697, %v588
      %v715 = vsel %vm701, %v698, %v590
      %v716 = vsel %vm701, %v699, %v592
      %v717 = vsel %vm701, %v700, %v594
      %vm718 = vcmask 261120
      %v719 = vsel %vm718, %v702, %v620
      %v720 = vsel %vm718, %v703, %v622
      %v721 = vsel %vm718, %v704, %v624
      %v722 = vsel %vm718, %v705, %v626
      %v723 = vsel %vm718, %v706, %v628
      %v724 = vsel %vm718, %v707, %v630
      %v725 = vsel %vm718, %v708, %v632
      %v726 = vsel %vm718, %v709, %v634
      %v727 = vsel %vm718, %v710, %v636
      %v728 = vsel %vm718, %v711, %v638
      %v729 = vsel %vm718, %v712, %v640
      %v730 = vsel %vm718, %v713, %v642
      %v731 = vsel %vm718, %v714, %v644
      %v732 = vsel %vm718, %v715, %v646
      %v733 = vsel %vm718, %v716, %v648
      %v734 = vsel %vm718, %v717, %v650
      %v735 = vpack.c.bf16 %v720, %v719
      %v736 = vpack.c.bf16 %v722, %v721
      %v737 = vpack.c.bf16 %v724, %v723
      %v738 = vpack.c.bf16 %v726, %v725
      %v739 = vpack.c.bf16 %v728, %v727
      %v740 = vpack.c.bf16 %v730, %v729
      %v741 = vpack.c.bf16 %v732, %v731
      %v742 = vpack.c.bf16 %v734, %v733
      %v743 = vld [vmem:[%s1] sm:$0xf]
      %v744 = vld [vmem:[%s1 + $0x4] sm:$0xf]
      %v745 = vld [vmem:[%s1 + $0x8] sm:$0xf]
      %v746 = vld [vmem:[%s1 + $0xc] sm:$0xf]
      %v747 = vld [vmem:[%s1 + $0x10] sm:$0xf]
      %v748 = vld [vmem:[%s2] sm:$0x1]
      %v750 = vperm.slane %v748, 0
      %v757 = vunpack.c.l.b16 %v743
      %v758 = vunpack.c.l.b16 %v744
      %v759 = vunpack.c.l.b16 %v745
      %v760 = vunpack.c.l.b16 %v746
      %v761 = vunpack.c.l.b16 %v747
      %v762 = vpack.c.b16 %v758, %v757
      %v763 = vpack.c.b16 %v760, %v759
      %v764 = vpack.c.b16 %v761, %v761
      %vm767 = vcmask 326656
      %v769 = vsel %vm767, %v735, 0
      %v772 = vsel %vm767, %v736, 0
      %v775 = vsel %vm767, %v737, 0
      %v778 = vsel %vm767, %v738, 0
      %v781 = vsel %vm767, %v739, 0
      %v784 = vsel %vm767, %v740, 0
      %v787 = vsel %vm767, %v741, 0
      %v790 = vsel %vm767, %v742, 0
      %vm792 = vcmask 1043456
      %v794 = vsel %vm792, %v764, 0
      %796 = vmatpush.bf16.msra.mxu0 0
      %797 = vmatpush.bf16.msra.mxu0 0
      %798 = vmatpush.bf16.msra.mxu0 0
      %799 = vmatpush.bf16.msra.mxu0 0
      %800 = vmatpush.bf16.msra.mxu0 0
      %801 = vmatpush.bf16.msra.mxu0 %v794
      %802 = vmatpush.bf16.msra.mxu0 %v763
      %803 = vmatpush.bf16.msra.mxu0 %v762
      %804 = vmatmul.bf16.gmra.mxu0 %v769
      %v805 = vpop.f32.mrf.mxu0
      %v806 = vadd.f32 %v750, %v805
      %v807 = vpop.f32.mrf.mxu0
      %v808 = vadd.f32 %v750, %v807
      %809 = vmatmul.bf16.gmra.mxu0 %v772
      %v810 = vpop.f32.mrf.mxu0
      %v811 = vadd.f32 %v750, %v810
      %v812 = vpop.f32.mrf.mxu0
      %v813 = vadd.f32 %v750, %v812
      %814 = vmatmul.bf16.gmra.mxu0 %v775
      %v815 = vpop.f32.mrf.mxu0
      %v816 = vadd.f32 %v750, %v815
      %v817 = vpop.f32.mrf.mxu0
      %v818 = vadd.f32 %v750, %v817
      %819 = vmatmul.bf16.gmra.mxu0 %v778
      %v820 = vpop.f32.mrf.mxu0
      %v821 = vadd.f32 %v750, %v820
      %v822 = vpop.f32.mrf.mxu0
      %v823 = vadd.f32 %v750, %v822
      %824 = vmatmul.bf16.gmra.mxu0 %v781
      %v825 = vpop.f32.mrf.mxu0
      %v826 = vadd.f32 %v750, %v825
      %v827 = vpop.f32.mrf.mxu0
      %v828 = vadd.f32 %v750, %v827
      %829 = vmatmul.bf16.gmra.mxu0 %v784
      %v830 = vpop.f32.mrf.mxu0
      %v831 = vadd.f32 %v750, %v830
      %v832 = vpop.f32.mrf.mxu0
      %v833 = vadd.f32 %v750, %v832
      %834 = vmatmul.bf16.gmra.mxu0 %v787
      %v835 = vpop.f32.mrf.mxu0
      %v836 = vadd.f32 %v750, %v835
      %v837 = vpop.f32.mrf.mxu0
      %v838 = vadd.f32 %v750, %v837
      %839 = vmatmul.bf16.gmra.mxu0 %v790
      %v840 = vpop.f32.mrf.mxu0
      %v841 = vadd.f32 %v750, %v840
      %v842 = vpop.f32.mrf.mxu0
      %v843 = vadd.f32 %v750, %v842
      %844 = vdwg.mxu0
      %v845 = vsel %vm718, %v806, -inf
      %846 = vmax.xlane.f32.xlu0 %v845
      %v847 = vpop.xlane.xlu0 %846
      %v848 = vsel %vm718, %v808, -inf
      %849 = vmax.xlane.f32.xlu0 %v848
      %v850 = vpop.xlane.xlu0 %849
      %v851 = vsel %vm718, %v811, -inf
      %852 = vmax.xlane.f32.xlu0 %v851
      %v853 = vpop.xlane.xlu0 %852
      %v854 = vsel %vm718, %v813, -inf
      %855 = vmax.xlane.f32.xlu0 %v854
      %v856 = vpop.xlane.xlu0 %855
      %v857 = vsel %vm718, %v816, -inf
      %858 = vmax.xlane.f32.xlu0 %v857
      %v859 = vpop.xlane.xlu0 %858
      %v860 = vsel %vm718, %v818, -inf
      %861 = vmax.xlane.f32.xlu0 %v860
      %v862 = vpop.xlane.xlu0 %861
      %v863 = vsel %vm718, %v821, -inf
      %864 = vmax.xlane.f32.xlu0 %v863
      %v865 = vpop.xlane.xlu0 %864
      %v866 = vsel %vm718, %v823, -inf
      %867 = vmax.xlane.f32.xlu0 %v866
      %v868 = vpop.xlane.xlu0 %867
      %v869 = vsel %vm718, %v826, -inf
      %870 = vmax.xlane.f32.xlu0 %v869
      %v871 = vpop.xlane.xlu0 %870
      %v872 = vsel %vm718, %v828, -inf
      %873 = vmax.xlane.f32.xlu0 %v872
      %v874 = vpop.xlane.xlu0 %873
      %v875 = vsel %vm718, %v831, -inf
      %876 = vmax.xlane.f32.xlu0 %v875
      %v877 = vpop.xlane.xlu0 %876
      %v878 = vsel %vm718, %v833, -inf
      %879 = vmax.xlane.f32.xlu0 %v878
      %v880 = vpop.xlane.xlu0 %879
      %v881 = vsel %vm718, %v836, -inf
      %882 = vmax.xlane.f32.xlu0 %v881
      %v883 = vpop.xlane.xlu0 %882
      %v884 = vsel %vm718, %v838, -inf
      %885 = vmax.xlane.f32.xlu0 %v884
      %v886 = vpop.xlane.xlu0 %885
      %v887 = vsel %vm718, %v841, -inf
      %888 = vmax.xlane.f32.xlu0 %v887
      %v889 = vpop.xlane.xlu0 %888
      %v890 = vsel %vm718, %v843, -inf
      %891 = vmax.xlane.f32.xlu0 %v890
      %v892 = vpop.xlane.xlu0 %891
      %v893 = vld [vmem:[%s3] sm:$0xff]
      %v894 = vld [vmem:[#allocation2] sm:$0x1]
      %v896 = vperm.slane %v894, 0
      %898 = vmatpush.msra.mxu0 %v892
      %899 = vmatpush.msra.mxu0 %v889
      %900 = vmatpush.msra.mxu0 %v886
      %901 = vmatpush.msra.mxu0 %v883
      %902 = vmatpush.msra.mxu0 %v880
      %903 = vmatpush.msra.mxu0 %v877
      %904 = vmatpush.msra.mxu0 %v874
      %905 = vmatpush.msra.mxu0 %v871
      %906 = vmatpush.msra.mxu0 %v868
      %907 = vmatpush.msra.mxu0 %v865
      %908 = vmatpush.msra.mxu0 %v862
      %909 = vmatpush.msra.mxu0 %v859
      %910 = vmatpush.msra.mxu0 %v856
      %911 = vmatpush.msra.mxu0 %v853
      %912 = vmatpush.msra.mxu0 %v850
      %913 = vmatpush.msra.mxu0 %v847
      %914 = vmatmul.f32.gmra.mxu0 %v893
      %v915 = vpop.f32.mrf.mxu0
      %v916 = vadd.f32 %v896, %v915
      %917 = vdwg.mxu0
      %v918 = vsub.f32 0.0, %v916
      %v919 = vmul.f32 %v918, 1.442695
      %v920 = vpow.pop %v919
      %v921 = vadd.f32 %v920, 1.0
      %v922 = vrcp.pop %v921
      %v923 = vmul.f32 %v921, %v922
      %v924 = vsub.f32 1.0, %v923
      %v925 = vmul.f32 %v922, %v924
      %v926 = vadd.f32 %v922, %v925
      %vm927 = vweird.f32 %v921
      %vm928 = vweird.f32 %v922
      %vm929 = vmor %vm927, %vm928
      %v930 = vsel %vm929, %v922, %v926
      %v931 = vand.u32 2147483647, %v921
      %vm932 = vcmp.eq.f32.partialorder %v931, 8.507059e+37
      %v933 = vand.u32 %v921, 2147483648
      %v934 = vor.u32 1.1754944e-38, %v933
      %v935 = vsel %vm932, %v934, %v930
      %v936 = vmul.f32 1.0, %v935
      %vm937 = vcmask 7168
      %938 = vst.msk [vmem:[%s229] sm:$0xff] %vm937, %v936
      %p939 = scmp.lt.s32.totalorder %s18, 1
      %s940 = scalar_select %p939, %s18, 1
      %s941 = smul.addr %s940, 8
      %s942 = scalar_lea.vmem %s5, %s941
      // Predicated region
      $region41: #{forward.1} parent=39 // pred_check
        %p943 = pneg %p146
      $region42: #{forward.1} parent=39 // pred_check_branch
        %945 = sbr.rel (%p943) target = $region44
      $region43: #{forward.1} parent=39 // pred_region
        _
      $region44: #{forward.1} parent=39 // pred_fallthru
        _
    $region40: #{forward.1} parent=5 // pred_fallthru
      _
    %p946 = scmp.le.s32.totalorder 2, %s13
    // Predicated region
    $region45: #{forward.1} parent=5 // pred_check
      %p947 = pneg %p946
    $region46: #{forward.1} parent=5 // pred_check_branch
      %949 = sbr.rel (%p947) target = $region48
    $region47: #{forward.1} parent=5 // pred_region
      %s950 = ssub.s32 %s13, 2
      // Predicated region
      $region49: #{forward.1} parent=47 // pred_check
        %p951 = pneg %p152
      $region50: #{forward.1} parent=47 // pred_check_branch
        %953 = sbr.rel (%p951) target = $region52
      $region51: #{forward.1} parent=47 // pred_region
        %p954 = scmp.lt.s32.totalorder %s19, 1
        %s955 = scalar_select %p954, %s19, 1
        %s956 = smul.addr %s955, 8
        %s957 = scalar_lea.vmem %s5, %s956
      $region52: #{forward.1} parent=47 // pred_fallthru
        _
    $region48: #{forward.1} parent=5 // pred_fallthru
      _
  $region6: #{forward.1} parent=0 // loop_footer
    %s17 = sadd.s32 1, %s13
  $region7: #{forward.1} parent=0 // loop_footer_branch
    %12 = sbr.rel target = $region3
  $region8: #{forward.1} parent=0 // loop_exit
    _

</llo_original>
